<compile_context>
chip_gen: v7x
topology: tpu7x:2x2x1
jax: 0.10.0
libtpu: 0.0.40
codegen_flags: <defaults>
</compile_context>

<pallas_src>
import functools

import jax
import jax.numpy as jnp
from jax import lax
from jax.experimental import pallas as pl
from jax.experimental.pallas import tpu as pltpu

SUBLANES = 8
LANES = 128
_COLS_CAP = 4096  # keep cols moderate so rows stay tileable


def _hw_defaults():
    """Per-generation (tile_bytes, vmem_limit_bytes, num_slices)."""
    mib = 1024 * 1024
    vmem = 0
    get_info = getattr(pltpu, "get_tpu_info", None)
    if get_info is not None:
        try:
            vmem = int(getattr(get_info(), "vmem_capacity_bytes", 0) or 0)
        except Exception:
            vmem = 0
    if vmem >= 96 * mib:
        # v5e / v6e class: 128 MiB VMEM, single TensorCore per chip.
        return 8 * mib, 64 * mib, 1
    if vmem > 0:
        # v7x class: 64 MiB VMEM per TC, 2 TensorCores -> capped tiles, 2 slices.
        return 4 * mib, 48 * mib, 2
    # Unknown hardware: conservative.
    return 4 * mib, 32 * mib, 1


def _lane_dense_view(n_elems, shape, sublane_min):
    """Pick a contiguous (rows, cols) factorization with cols % 128 == 0 when possible."""
    if n_elems % LANES == 0:
        cap = min(n_elems, _COLS_CAP)
        cands = [c for c in range(LANES, cap + 1, LANES) if n_elems % c == 0]
        good = [c for c in cands if (n_elems // c) % sublane_min == 0]
        cols = max(good) if good else max(cands)
    else:
        # No 128-multiple divisor: keep the natural last dim (masked stores,
        # but still a fully correct path).
        cols = shape[-1] if len(shape) >= 2 else n_elems
    return n_elems // cols, cols


def _l1_partial_kernel(gt_ref, pred_ref, out_ref, acc_ref, *,
                       rows_valid, row_tile, cols, out_cols,
                       tiles_total, tiles_per_slice, mask_tail, needs_guard):
    """Accumulate |pred - gt| into a resident (8, cols) scratch; fold + emit at the end.

    Grid: (slice p ["parallel", per-TensorCore], row-tile j ["arbitrary"]).
    """
    p = pl.program_id(0)
    j = pl.program_id(1)
    t = p * tiles_per_slice + j          # global row-tile index
    groups = row_tile // SUBLANES        # static

    @pl.when(j == 0)
    def _init():
        acc_ref[...] = jnp.zeros_like(acc_ref)

    def _step(r0, mask):
        d = jnp.abs(pred_ref[pl.ds(r0, SUBLANES), :].astype(jnp.float32)
                    - gt_ref[pl.ds(r0, SUBLANES), :].astype(jnp.float32))
        if mask:
            row_ids = (t * row_tile + r0
                       + lax.broadcasted_iota(jnp.int32, d.shape, 0))
            d = jnp.where(row_ids < rows_valid, d, jnp.float32(0.0))
        acc_ref[...] += d

    def _accumulate(mask):
        if groups <= 8:
            # Short, fully unrolled streaming fold (no full-tile temp).
            for g in range(groups):
                _step(g * SUBLANES, mask)
        else:
            def body(g, carry):
                _step(pl.multiple_of(g * SUBLANES, SUBLANES), mask)
                return carry
            lax.fori_loop(0, groups, body, 0, unroll=4)

    last_tile = tiles_total - 1
    if mask_tail:
        # Only the ragged tail tile pays the iota/mask cost.
        pl.when(t == last_tile)(lambda: _accumulate(True))
        if tiles_total > 1:
            pl.when(t < last_tile)(lambda: _accumulate(False))
    elif needs_guard:
        # Odd split across slices: skip the duplicate (clamped) tile.
        pl.when(t < tiles_total)(lambda: _accumulate(False))
    else:
        _accumulate(False)

    @pl.when(j == tiles_per_slice - 1)
    def _finalize():
        acc = acc_ref[...]
        if out_cols != cols:
            # Fold 128-lane groups (runs once per slice; 128-aligned static slices).
            folded = acc[:, 0:out_cols]
            for g in range(1, cols // out_cols):
                folded = folded + acc[:, g * out_cols:(g + 1) * out_cols]
            acc = folded
        out_ref[...] = acc


def mel_spectrogram_loss(gt_spectrogram, pred_spectrogram,
                         mel_spectrogram_multiplier, *,
                         tile_bytes=None, vmem_limit_bytes=None,
                         num_slices=None):
    assert gt_spectrogram.shape == pred_spectrogram.shape
    assert gt_spectrogram.dtype == pred_spectrogram.dtype

    n_elems = gt_spectrogram.size
    itemsize = jnp.dtype(gt_spectrogram.dtype).itemsize
    sub = max(SUBLANES, 32 // itemsize)   # 8 f32 / 16 bf16 / 32 int8

    hw_tile, hw_vmem, hw_slices = _hw_defaults()
    tile_bytes = hw_tile if tile_bytes is None else int(tile_bytes)
    vmem_limit_bytes = hw_vmem if vmem_limit_bytes is None else int(vmem_limit_bytes)
    num_slices = hw_slices if num_slices is None else int(num_slices)

    # Free, contiguous, lane-dense 2-D view (no padded copies).
    rows, cols = _lane_dense_view(n_elems, gt_spectrogram.shape, sub)
    gt2 = gt_spectrogram.reshape(rows, cols)
    pred2 = pred_spectrogram.reshape(rows, cols)

    # Tile budget: dtype-aware, lane-padding-aware, sublane-aligned.
    padded_cols = pl.cdiv(cols, LANES) * LANES
    bytes_per_row = padded_cols * itemsize
    budget_rows = max(sub, (tile_bytes // bytes_per_row) // sub * sub)
    rows_cap = pl.cdiv(rows, sub) * sub
    row_tile = min(rows_cap, budget_rows)

    tiles_total = pl.cdiv(rows, row_tile)
    num_slices = max(1, min(num_slices, tiles_total))
    tiles_per_slice = pl.cdiv(tiles_total, num_slices)
    needs_guard = num_slices * tiles_per_slice != tiles_total
    mask_tail = rows % row_tile != 0

    out_cols = LANES if cols % LANES == 0 else cols

    def in_index_map(p, j):
        t = p * tiles_per_slice + j
        if needs_guard:
            t = jnp.minimum(t, tiles_total - 1)   # keep the DMA in bounds
        return (t, 0)

    kernel = functools.partial(
        _l1_partial_kernel,
        rows_valid=rows, row_tile=row_tile, cols=cols, out_cols=out_cols,
        tiles_total=tiles_total, tiles_per_slice=tiles_per_slice,
        mask_tail=mask_tail, needs_guard=needs_guard)

    partials = pl.pallas_call(
        kernel,
        out_shape=jax.ShapeDtypeStruct((num_slices * SUBLANES, out_cols),
                                       jnp.float32),
        grid_spec=pltpu.PrefetchScalarGridSpec(
            num_scalar_prefetch=0,
            grid=(num_slices, tiles_per_slice),
            in_specs=[
                pl.BlockSpec((row_tile, cols), in_index_map),
                pl.BlockSpec((row_tile, cols), in_index_map),
            ],
            out_specs=pl.BlockSpec((SUBLANES, out_cols), lambda p, j: (p, 0)),
            scratch_shapes=[pltpu.VMEM((SUBLANES, cols), jnp.float32)],
        ),
        compiler_params=pltpu.CompilerParams(
            dimension_semantics=("parallel", "arbitrary"),
            vmem_limit_bytes=vmem_limit_bytes,
        ),
        cost_estimate=pl.CostEstimate(
            flops=3 * n_elems,
            transcendentals=0,
            bytes_accessed=2 * n_elems * itemsize
            + num_slices * SUBLANES * out_cols * 4),
    )(gt2, pred2)

    # Tiny epilogue: sum of the per-slice (8, 128) partials + traced scale
    # (changing the multiplier does not recompile the kernel).
    scale = jnp.asarray(mel_spectrogram_multiplier, jnp.float32) / jnp.float32(n_elems)
    return scale * jnp.sum(partials)


if __name__ == "__main__":
    mel_spectrogram_multiplier = 45.0

    key = jax.random.PRNGKey(0)
    k1, k2 = jax.random.split(key)
    # mel-spectrogram-like inputs: (batch=2, n_mels=80, frames=64)
    gt = jax.random.normal(k1, (2, 80, 64), dtype=jnp.float32)
    pred = jax.random.normal(k2, (2, 80, 64), dtype=jnp.float32)

    loss = jax.block_until_ready(
        mel_spectrogram_loss(gt, pred, mel_spectrogram_multiplier))
    ref = mel_spectrogram_multiplier * jnp.mean(jnp.abs(pred - gt))
    assert jnp.allclose(loss, ref, rtol=1e-5, atol=1e-5), (loss, ref)

    # Multi-tile pipeline + 2-slice split with duplicate-tile guard + ragged
    # tail mask + the non-128-divisible fallback view (13000 elems).
    k3, k4 = jax.random.split(k2)
    gt_b = jax.random.normal(k3, (2, 65, 100), dtype=jnp.float32)
    pred_b = jax.random.normal(k4, (2, 65, 100), dtype=jnp.float32)
    loss_b = jax.block_until_ready(
        mel_spectrogram_loss(gt_b, pred_b, 3.5,
                             tile_bytes=16 * 128 * 4, num_slices=2))
    ref_b = 3.5 * jnp.mean(jnp.abs(pred_b - gt_b))
    assert jnp.allclose(loss_b, ref_b, rtol=1e-5, atol=1e-5), (loss_b, ref_b)

    # bf16 path: dtype-aware sublane alignment (16) + lane-dense view + lane fold.
    k5, k6 = jax.random.split(k4)
    gt_c = jax.random.normal(k5, (4, 80, 64), dtype=jnp.float32).astype(jnp.bfloat16)
    pred_c = jax.random.normal(k6, (4, 80, 64), dtype=jnp.float32).astype(jnp.bfloat16)
    loss_c = jax.block_until_ready(
        mel_spectrogram_loss(gt_c, pred_c, 2.0, tile_bytes=16 * 2560 * 2))
    ref_c = 2.0 * jnp.mean(jnp.abs(pred_c.astype(jnp.float32)
                                   - gt_c.astype(jnp.float32)))
    assert jnp.allclose(loss_c, ref_c, rtol=1e-3, atol=1e-3), (loss_c, ref_c)

    print("KERNEL_OK")
</pallas_src>

<mosaic_0001>
module attributes {stable_mosaic.version = 11 : i64} {
  func.func @_l1_partial_kernel(%arg0: i32, %arg1: i32, %arg2: memref<8x1280xf32, #tpu.memory_space<vmem>>, %arg3: memref<8x1280xf32, #tpu.memory_space<vmem>>, %arg4: memref<8x128xf32, #tpu.memory_space<vmem>>, %arg5: memref<8x1280xf32, #tpu.memory_space<vmem>>) attributes {dimension_semantics = [#tpu.dimension_semantics<parallel>, #tpu.dimension_semantics<arbitrary>], iteration_bounds = array<i64: 1, 1>, scalar_prefetch = 0 : i64, scratch_operands = 1 : i64, tpu.core_type = #tpu.core_type<tc>, window_params = [{transform_indices = @transform_0, window_bounds = array<i64: 8, 1280>}, {transform_indices = @transform_1, window_bounds = array<i64: 8, 1280>}, {transform_indices = @transform_2, window_bounds = array<i64: 8, 128>}]} {
    %c0_i32 = arith.constant 0 : i32
    %0 = arith.cmpi eq, %arg1, %c0_i32 : i32
    %1 = arith.extui %0 : i1 to i32
    %c0_i32_0 = arith.constant 0 : i32
    %2 = arith.cmpi ne, %1, %c0_i32_0 : i32
    scf.if %2 {
      %cst = arith.constant 0.000000e+00 : f32
      %13 = vector.broadcast %cst : f32 to vector<8x1280xf32>
      %c0_10 = arith.constant 0 : index
      %c0_11 = arith.constant 0 : index
      %14 = vector.load %arg5[%c0_10, %c0_11] : memref<8x1280xf32, #tpu.memory_space<vmem>>, vector<8x1280xf32>
      tpu.vector_store %arg5[%c0_10, %c0_11], %13 {strides = array<i32>} : memref<8x1280xf32, #tpu.memory_space<vmem>>, vector<8x1280xf32>,
    } else {
    }
    %c0 = arith.constant 0 : index
    %c0_1 = arith.constant 0 : index
    %3 = vector.load %arg3[%c0, %c0_1] : memref<8x1280xf32, #tpu.memory_space<vmem>>, vector<8x1280xf32>
    %c0_2 = arith.constant 0 : index
    %c0_3 = arith.constant 0 : index
    %4 = vector.load %arg2[%c0_2, %c0_3] : memref<8x1280xf32, #tpu.memory_space<vmem>>, vector<8x1280xf32>
    %5 = arith.subf %3, %4 : vector<8x1280xf32>
    %6 = math.absf %5 : vector<8x1280xf32>
    %c0_4 = arith.constant 0 : index
    %c0_5 = arith.constant 0 : index
    %7 = vector.load %arg5[%c0_4, %c0_5] : memref<8x1280xf32, #tpu.memory_space<vmem>>, vector<8x1280xf32>
    %8 = arith.addf %7, %6 : vector<8x1280xf32>
    %c0_6 = arith.constant 0 : index
    %c0_7 = arith.constant 0 : index
    %9 = vector.load %arg5[%c0_6, %c0_7] : memref<8x1280xf32, #tpu.memory_space<vmem>>, vector<8x1280xf32>
    tpu.vector_store %arg5[%c0_6, %c0_7], %8 {strides = array<i32>} : memref<8x1280xf32, #tpu.memory_space<vmem>>, vector<8x1280xf32>,
    %c0_i32_8 = arith.constant 0 : i32
    %10 = arith.cmpi eq, %arg1, %c0_i32_8 : i32
    %11 = arith.extui %10 : i1 to i32
    %c0_i32_9 = arith.constant 0 : i32
    %12 = arith.cmpi ne, %11, %c0_i32_9 : i32
    scf.if %12 {
      %c0_10 = arith.constant 0 : index
      %c0_11 = arith.constant 0 : index
      %13 = vector.load %arg5[%c0_10, %c0_11] : memref<8x1280xf32, #tpu.memory_space<vmem>>, vector<8x1280xf32>
      %14 = vector.extract_strided_slice %13 {offsets = [0, 0], sizes = [8, 128], strides = [1, 1]} : vector<8x1280xf32> to vector<8x128xf32>
      %15 = vector.extract_strided_slice %13 {offsets = [0, 128], sizes = [8, 128], strides = [1, 1]} : vector<8x1280xf32> to vector<8x128xf32>
      %16 = arith.addf %14, %15 : vector<8x128xf32>
      %17 = vector.extract_strided_slice %13 {offsets = [0, 256], sizes = [8, 128], strides = [1, 1]} : vector<8x1280xf32> to vector<8x128xf32>
      %18 = arith.addf %16, %17 : vector<8x128xf32>
      %19 = vector.extract_strided_slice %13 {offsets = [0, 384], sizes = [8, 128], strides = [1, 1]} : vector<8x1280xf32> to vector<8x128xf32>
      %20 = arith.addf %18, %19 : vector<8x128xf32>
      %21 = vector.extract_strided_slice %13 {offsets = [0, 512], sizes = [8, 128], strides = [1, 1]} : vector<8x1280xf32> to vector<8x128xf32>
      %22 = arith.addf %20, %21 : vector<8x128xf32>
      %23 = vector.extract_strided_slice %13 {offsets = [0, 640], sizes = [8, 128], strides = [1, 1]} : vector<8x1280xf32> to vector<8x128xf32>
      %24 = arith.addf %22, %23 : vector<8x128xf32>
      %25 = vector.extract_strided_slice %13 {offsets = [0, 768], sizes = [8, 128], strides = [1, 1]} : vector<8x1280xf32> to vector<8x128xf32>
      %26 = arith.addf %24, %25 : vector<8x128xf32>
      %27 = vector.extract_strided_slice %13 {offsets = [0, 896], sizes = [8, 128], strides = [1, 1]} : vector<8x1280xf32> to vector<8x128xf32>
      %28 = arith.addf %26, %27 : vector<8x128xf32>
      %29 = vector.extract_strided_slice %13 {offsets = [0, 1024], sizes = [8, 128], strides = [1, 1]} : vector<8x1280xf32> to vector<8x128xf32>
      %30 = arith.addf %28, %29 : vector<8x128xf32>
      %31 = vector.extract_strided_slice %13 {offsets = [0, 1152], sizes = [8, 128], strides = [1, 1]} : vector<8x1280xf32> to vector<8x128xf32>
      %32 = arith.addf %30, %31 : vector<8x128xf32>
      %c0_12 = arith.constant 0 : index
      %c0_13 = arith.constant 0 : index
      %33 = vector.load %arg4[%c0_12, %c0_13] : memref<8x128xf32, #tpu.memory_space<vmem>>, vector<8x128xf32>
      tpu.vector_store %arg4[%c0_12, %c0_13], %32 {strides = array<i32>} : memref<8x128xf32, #tpu.memory_space<vmem>>, vector<8x128xf32>,
    } else {
    }
    return
  }
  func.func @transform_0(%arg0: i32, %arg1: i32) -> (i32, i32) {
    %c1_i32 = arith.constant 1 : i32
    %0 = arith.muli %arg0, %c1_i32 : i32
    %1 = arith.addi %0, %arg1 : i32
    %c0_i32 = arith.constant 0 : i32
    %c0_i32_0 = arith.constant 0 : i32
    return %1, %c0_i32 : i32, i32
  }
  func.func @transform_1(%arg0: i32, %arg1: i32) -> (i32, i32) {
    %c1_i32 = arith.constant 1 : i32
    %0 = arith.muli %arg0, %c1_i32 : i32
    %1 = arith.addi %0, %arg1 : i32
    %c0_i32 = arith.constant 0 : i32
    %c0_i32_0 = arith.constant 0 : i32
    return %1, %c0_i32 : i32, i32
  }
  func.func @transform_2(%arg0: i32, %arg1: i32) -> (i32, i32) {
    %c0_i32 = arith.constant 0 : i32
    %c0_i32_0 = arith.constant 0 : i32
    return %arg0, %c0_i32 : i32, i32
  }
}

</mosaic_0001>

<llo_original>
// kernel: tpu_custom_call.1
$region0: #{tpu_custom_call.1}
  #allocation0 [shape = 'u32[]', space=smem, size = 0x4, offset = 0x4, fixed_abs, tag = 'smem constant byte address 0x4 - core index']
  #allocation1 [shape = 'u32[144,128]{1,0:T(1,128)}', space=vmem, size = 0x12000, scoped, tag = 'internal scratch']
  #allocation2 [shape = 'f32[8,1280]{1,0:T(8,128)}', space=vmem, size = 0xa000, scoped, tag = 'scratch operand']
  %s0 = inlined_call_operand.hbm [shape: f32[8,1280], index: 0, kind: input, shape index: {}]
  %s1 = inlined_call_operand.hbm [shape: f32[8,1280], index: 1, kind: input, shape index: {}]
  %s2 = inlined_call_operand.hbm [shape: f32[8,128], index: 2, kind: output, shape index: {}]
  %s3 = sld [smem:[#allocation0]]
  $region34: #{tpu_custom_call.1} parent=0
    _
  %s5 = ssub.s32 1, %s3
  %s6 = scalar_select 0, %s5, %s3
  $region1: #{tpu_custom_call.1} parent=0
    #allocation3 [shape = 'u8[40960]{0}', space=vmem, size = 0xa000, scoped, tag = 'input window, operand 0, single buffered']
    #allocation4 [shape = 's32[1]{0}', space=sflag, size = 0x4, scoped, tag = 'scoped memory for tpu_custom_call.1']
    #allocation5 [shape = 's32[1]{0}', space=sflag, size = 0x4, scoped, tag = 'scoped memory for tpu_custom_call.1']
    #allocation6 [shape = 'u8[40960]{0}', space=vmem, size = 0xa000, scoped, tag = 'input window, operand 1, single buffered']
    #allocation7 [shape = 's32[1]{0}', space=sflag, size = 0x4, scoped, tag = 'scoped memory for tpu_custom_call.1']
    #allocation8 [shape = 'u8[4096]{0}', space=vmem, size = 0x1000, scoped, tag = 'output window, operand 0, single buffered']
    %7 = vsyncpa [#allocation4], 0
    %8 = vsyncpa [#allocation7], 0
    %9 = vsyncpa [#allocation5], 0
    // Predicated region
    $region2: #{tpu_custom_call.1} parent=1 // pred_check
      _
    $region3: #{tpu_custom_call.1} parent=1 // pred_check_branch
      %11 = sbr.rel (0) target = $region5
    $region4: #{tpu_custom_call.1} parent=1 // pred_region
      %s12 = sadd.s32 0, 0
      %s14 = ssub.s32 1280, 1280
      %15 = vsyncadd [#allocation4], %s14
      %s16 = smul.addr %s12, 10
      %s17 = smul.addr %s16, 128
      %s18 = scalar_lea.hbm %s0, %s17
      %s20 = sshll.u32 [#allocation3], 4
      %s21 = int_to_ptr.vmem [resolvable:$true] %s20
      %23 = dma.hbm_to_vmem [thread:$0]  %s18, 1280, %s21, [#allocation4]
    $region5: #{tpu_custom_call.1} parent=1 // pred_fallthru
      _
    // Predicated region
    $region6: #{tpu_custom_call.1} parent=1 // pred_check
      _
    $region7: #{tpu_custom_call.1} parent=1 // pred_check_branch
      %25 = sbr.rel (0) target = $region9
    $region8: #{tpu_custom_call.1} parent=1 // pred_region
      %s26 = sadd.s32 0, 0
      %s28 = ssub.s32 1280, 1280
      %29 = vsyncadd [#allocation7], %s28
      %s30 = smul.addr %s26, 10
      %s31 = smul.addr %s30, 128
      %s32 = scalar_lea.hbm %s1, %s31
      %s34 = sshll.u32 [#allocation6], 4
      %s35 = int_to_ptr.vmem [resolvable:$true] %s34
      %37 = dma.hbm_to_vmem [thread:$0]  %s32, 1280, %s35, [#allocation7]
    $region9: #{tpu_custom_call.1} parent=1 // pred_fallthru
      _
    // Predicated region
    $region10: #{tpu_custom_call.1} parent=1 // pred_check
      _
    $region11: #{tpu_custom_call.1} parent=1 // pred_check_branch
      %39 = sbr.rel (0) target = $region13
    $region12: #{tpu_custom_call.1} parent=1 // pred_region
      %40 = dma.done [#allocation4], 1280
    $region13: #{tpu_custom_call.1} parent=1 // pred_fallthru
      _
    // Predicated region
    $region14: #{tpu_custom_call.1} parent=1 // pred_check
      _
    $region15: #{tpu_custom_call.1} parent=1 // pred_check_branch
      %42 = sbr.rel (0) target = $region17
    $region16: #{tpu_custom_call.1} parent=1 // pred_region
      %43 = dma.done [#allocation7], 1280
    $region17: #{tpu_custom_call.1} parent=1 // pred_fallthru
      _
    %s44 = sadd.s32 0, 0
    %s45 = sadd.s32 0, 0
    %p46 = scmp.eq.s32.totalorder 0, 0
    // Predicated region
    $region18: #{tpu_custom_call.1} parent=1 // pred_check
      %p47 = pneg %p46
    $region19: #{tpu_custom_call.1} parent=1 // pred_check_branch
      %49 = sbr.rel (%p47) target = $region21
    $region20: #{tpu_custom_call.1} parent=1 // pred_region
      %50 = vst [vmem:[#allocation2] sm:$0xff] 0.0
      %51 = vst [vmem:[#allocation2 + $0x8] sm:$0xff] 0.0
      %52 = vst [vmem:[#allocation2 + $0x10] sm:$0xff] 0.0
      %53 = vst [vmem:[#allocation2 + $0x18] sm:$0xff] 0.0
      %54 = vst [vmem:[#allocation2 + $0x20] sm:$0xff] 0.0
      %55 = vst [vmem:[#allocation2 + $0x28] sm:$0xff] 0.0
      %56 = vst [vmem:[#allocation2 + $0x30] sm:$0xff] 0.0
      %57 = vst [vmem:[#allocation2 + $0x38] sm:$0xff] 0.0
      %58 = vst [vmem:[#allocation2 + $0x40] sm:$0xff] 0.0
      %59 = vst [vmem:[#allocation2 + $0x48] sm:$0xff] 0.0
    $region21: #{tpu_custom_call.1} parent=1 // pred_fallthru
      _
    %v60 = vld [vmem:[#allocation6] sm:$0xff]
    %v61 = vld [vmem:[#allocation6 + $0x8] sm:$0xff]
    %v62 = vld [vmem:[#allocation6 + $0x10] sm:$0xff]
    %v63 = vld [vmem:[#allocation6 + $0x18] sm:$0xff]
    %v64 = vld [vmem:[#allocation6 + $0x20] sm:$0xff]
    %v65 = vld [vmem:[#allocation6 + $0x28] sm:$0xff]
    %v66 = vld [vmem:[#allocation6 + $0x30] sm:$0xff]
    %v67 = vld [vmem:[#allocation6 + $0x38] sm:$0xff]
    %v68 = vld [vmem:[#allocation6 + $0x40] sm:$0xff]
    %v69 = vld [vmem:[#allocation6 + $0x48] sm:$0xff]
    %v70 = vld [vmem:[#allocation3] sm:$0xff]
    %v71 = vld [vmem:[#allocation3 + $0x8] sm:$0xff]
    %v72 = vld [vmem:[#allocation3 + $0x10] sm:$0xff]
    %v73 = vld [vmem:[#allocation3 + $0x18] sm:$0xff]
    %v74 = vld [vmem:[#allocation3 + $0x20] sm:$0xff]
    %v75 = vld [vmem:[#allocation3 + $0x28] sm:$0xff]
    %v76 = vld [vmem:[#allocation3 + $0x30] sm:$0xff]
    %v77 = vld [vmem:[#allocation3 + $0x38] sm:$0xff]
    %v78 = vld [vmem:[#allocation3 + $0x40] sm:$0xff]
    %v79 = vld [vmem:[#allocation3 + $0x48] sm:$0xff]
    %v80 = vsub.f32 %v60, %v70
    %v81 = vsub.f32 %v61, %v71
    %v82 = vsub.f32 %v62, %v72
    %v83 = vsub.f32 %v63, %v73
    %v84 = vsub.f32 %v64, %v74
    %v85 = vsub.f32 %v65, %v75
    %v86 = vsub.f32 %v66, %v76
    %v87 = vsub.f32 %v67, %v77
    %v88 = vsub.f32 %v68, %v78
    %v89 = vsub.f32 %v69, %v79
    %v90 = vand.u32 2147483647, %v80
    %v91 = vand.u32 2147483647, %v81
    %v92 = vand.u32 2147483647, %v82
    %v93 = vand.u32 2147483647, %v83
    %v94 = vand.u32 2147483647, %v84
    %v95 = vand.u32 2147483647, %v85
    %v96 = vand.u32 2147483647, %v86
    %v97 = vand.u32 2147483647, %v87
    %v98 = vand.u32 2147483647, %v88
    %v99 = vand.u32 2147483647, %v89
    %v100 = vld [vmem:[#allocation2] sm:$0xff]
    %v101 = vld [vmem:[#allocation2 + $0x8] sm:$0xff]
    %v102 = vld [vmem:[#allocation2 + $0x10] sm:$0xff]
    %v103 = vld [vmem:[#allocation2 + $0x18] sm:$0xff]
    %v104 = vld [vmem:[#allocation2 + $0x20] sm:$0xff]
    %v105 = vld [vmem:[#allocation2 + $0x28] sm:$0xff]
    %v106 = vld [vmem:[#allocation2 + $0x30] sm:$0xff]
    %v107 = vld [vmem:[#allocation2 + $0x38] sm:$0xff]
    %v108 = vld [vmem:[#allocation2 + $0x40] sm:$0xff]
    %v109 = vld [vmem:[#allocation2 + $0x48] sm:$0xff]
    %v110 = vadd.f32 %v100, %v90
    %v111 = vadd.f32 %v101, %v91
    %v112 = vadd.f32 %v102, %v92
    %v113 = vadd.f32 %v103, %v93
    %v114 = vadd.f32 %v104, %v94
    %v115 = vadd.f32 %v105, %v95
    %v116 = vadd.f32 %v106, %v96
    %v117 = vadd.f32 %v107, %v97
    %v118 = vadd.f32 %v108, %v98
    %v119 = vadd.f32 %v109, %v99
    %120 = vst [vmem:[#allocation2] sm:$0xff] %v110
    %121 = vst [vmem:[#allocation2 + $0x8] sm:$0xff] %v111
    %122 = vst [vmem:[#allocation2 + $0x10] sm:$0xff] %v112
    %123 = vst [vmem:[#allocation2 + $0x18] sm:$0xff] %v113
    %124 = vst [vmem:[#allocation2 + $0x20] sm:$0xff] %v114
    %125 = vst [vmem:[#allocation2 + $0x28] sm:$0xff] %v115
    %126 = vst [vmem:[#allocation2 + $0x30] sm:$0xff] %v116
    %127 = vst [vmem:[#allocation2 + $0x38] sm:$0xff] %v117
    %128 = vst [vmem:[#allocation2 + $0x40] sm:$0xff] %v118
    %129 = vst [vmem:[#allocation2 + $0x48] sm:$0xff] %v119
    // Predicated region
    $region22: #{tpu_custom_call.1} parent=1 // pred_check
      %p130 = pneg %p46
    $region23: #{tpu_custom_call.1} parent=1 // pred_check_branch
      %132 = sbr.rel (%p130) target = $region25
    $region24: #{tpu_custom_call.1} parent=1 // pred_region
      %v133 = vld [vmem:[#allocation2] sm:$0xff]
      %v134 = vld [vmem:[#allocation2 + $0x8] sm:$0xff]
      %v135 = vld [vmem:[#allocation2 + $0x10] sm:$0xff]
      %v136 = vld [vmem:[#allocation2 + $0x18] sm:$0xff]
      %v137 = vld [vmem:[#allocation2 + $0x20] sm:$0xff]
      %v138 = vld [vmem:[#allocation2 + $0x28] sm:$0xff]
      %v139 = vld [vmem:[#allocation2 + $0x30] sm:$0xff]
      %v140 = vld [vmem:[#allocation2 + $0x38] sm:$0xff]
      %v141 = vld [vmem:[#allocation2 + $0x40] sm:$0xff]
      %v142 = vld [vmem:[#allocation2 + $0x48] sm:$0xff]
      %v143 = vadd.f32 %v133, %v134
      %v144 = vadd.f32 %v143, %v135
      %v145 = vadd.f32 %v144, %v136
      %v146 = vadd.f32 %v145, %v137
      %v147 = vadd.f32 %v146, %v138
      %v148 = vadd.f32 %v147, %v139
      %v149 = vadd.f32 %v148, %v140
      %v150 = vadd.f32 %v149, %v141
      %v151 = vadd.f32 %v150, %v142
      %152 = vst [vmem:[#allocation8] sm:$0xff] %v151
    $region25: #{tpu_custom_call.1} parent=1 // pred_fallthru
      _
    // Predicated region
    $region26: #{tpu_custom_call.1} parent=1 // pred_check
      _
    $region27: #{tpu_custom_call.1} parent=1 // pred_check_branch
      %154 = sbr.rel (0) target = $region29
    $region28: #{tpu_custom_call.1} parent=1 // pred_region
      %s156 = ssub.s32 128, 128
      %157 = vsyncadd [#allocation5], %s156
      %s159 = sshll.u32 [#allocation8], 4
      %s160 = int_to_ptr.vmem [resolvable:$true] %s159
      %162 = dma.vmem_to_hbm [thread:$0]  %s160, 128, %s2, [#allocation5]
    $region29: #{tpu_custom_call.1} parent=1 // pred_fallthru
      _
    // Predicated region
    $region30: #{tpu_custom_call.1} parent=1 // pred_check
      _
    $region31: #{tpu_custom_call.1} parent=1 // pred_check_branch
      %164 = sbr.rel (0) target = $region33
    $region32: #{tpu_custom_call.1} parent=1 // pred_region
      %165 = dma.done [#allocation5], 128
    $region33: #{tpu_custom_call.1} parent=1 // pred_fallthru
      _
    %166 = vsyncpa [#allocation4], 1
    %167 = vsyncpa [#allocation7], 1
    %168 = vsyncpa [#allocation5], 1

</llo_original>
